<compile_context>
chip_gen: v7x
topology: tpu7x:2x2x1
jax: 0.10.0
libtpu: 0.0.40
codegen_flags: <defaults>
</compile_context>

<pallas_src>
import jax
import jax.numpy as jnp
from jax.experimental import pallas as pl
from jax.experimental.pallas import tpu as pltpu


# ------------------------------ Pallas kernel ------------------------------ #

def _make_fused_mlp_kernel(num_layers):
    """Kernel refs: (x, Wt0, b0, Wt1, b1, ..., out). Wt_i is (D_in, D_out)."""

    def kernel(*refs):
        x_ref = refs[0]
        o_ref = refs[-1]
        h = x_ref[...].astype(jnp.float32)
        for i in range(num_layers):
            wt = refs[1 + 2 * i][...]         # (D_in, D_out)
            b = refs[2 + 2 * i][...]          # (1, D_out)
            h = jnp.dot(h, wt, preferred_element_type=jnp.float32) + b
            if i < num_layers - 1:
                h = jnp.where(h >= 0.0, h, 0.2 * h)   # LeakyReLU(0.2)
        o_ref[...] = h.astype(o_ref.dtype)

    return kernel


# ------------------------------ Pallas wrapper ------------------------------ #

def mlp_forward_pallas(x, params):
    """params: list of (W, b) with W: (D_out, D_in) [PyTorch layout], b: (D_out,)."""
    B = x.shape[0]
    x2 = x.reshape(B, -1)
    num_layers = len(params)
    out_dim = params[-1][0].shape[0]

    inputs = [x2]
    in_specs = [pl.BlockSpec(x2.shape, lambda i: (0, 0))]
    for w, b in params:
        wt = jnp.transpose(w)          # (D_in, D_out), done once on the host
        b2 = b.reshape(1, -1)          # (1, D_out)
        inputs += [wt, b2]
        in_specs += [
            pl.BlockSpec(wt.shape, lambda i: (0, 0)),
            pl.BlockSpec(b2.shape, lambda i: (0, 0)),
        ]

    return pl.pallas_call(
        _make_fused_mlp_kernel(num_layers),
        out_shape=jax.ShapeDtypeStruct((B, out_dim), x.dtype),
        grid_spec=pltpu.PrefetchScalarGridSpec(
            num_scalar_prefetch=0,
            grid=(1,),                 # everything fits in VMEM: one grid step
            in_specs=in_specs,
            out_specs=pl.BlockSpec((B, out_dim), lambda i: (0, 0)),
        ),
        compiler_params=pltpu.CompilerParams(
            dimension_semantics=("arbitrary",)),
    )(*inputs)


# ------------------------------ JAX reference ------------------------------- #

def mlp_forward_reference(x, params):
    h = x.reshape(x.shape[0], -1)
    n = len(params)
    for i, (w, b) in enumerate(params):
        h = jnp.dot(h, w.T, precision=jax.lax.Precision.HIGHEST) + b
        if i < n - 1:
            h = jnp.where(h >= 0.0, h, 0.2 * h)
    return h


# ---------------------------------- main ------------------------------------ #

if __name__ == "__main__":
    # Synthetic config consistent with the module:
    #   config.mlp_dims = [64, 128, 128], out_dim = 128
    #   input x: (B=2, 4, 16) -> flattened to (2, 64) by forward()
    mlp_dims = [64, 128, 128]
    out_dim = 128
    B = 2
    x_shape = (B, 4, 16)               # prod(4, 16) == mlp_dims[0]

    layer_dims = list(zip(mlp_dims[:-1], mlp_dims[1:])) + [(mlp_dims[-1], out_dim)]

    key = jax.random.PRNGKey(0)
    keys = jax.random.split(key, 2 * len(layer_dims) + 1)
    params = []
    for i, (din, dout) in enumerate(layer_dims):
        w = jax.random.normal(keys[2 * i], (dout, din), jnp.float32) / jnp.sqrt(float(din))
        b = 0.01 * jax.random.normal(keys[2 * i + 1], (dout,), jnp.float32)
        params.append((w, b))

    x = jax.random.normal(keys[-1], x_shape, jnp.float32)

    out = jax.block_until_ready(mlp_forward_pallas(x, params))
    ref = mlp_forward_reference(x, params)

    assert out.shape == (B, out_dim), out.shape
    assert jnp.allclose(out, ref, atol=1e-4, rtol=1e-4), (
        float(jnp.max(jnp.abs(out - ref))))
    print("KERNEL_OK")
</pallas_src>

<mosaic_0001>
module attributes {stable_mosaic.version = 11 : i64} {
  func.func @kernel(%arg0: i32, %arg1: memref<2x64xf32, #tpu.memory_space<vmem>>, %arg2: memref<64x128xf32, #tpu.memory_space<vmem>>, %arg3: memref<1x128xf32, #tpu.memory_space<vmem>>, %arg4: memref<128x128xf32, #tpu.memory_space<vmem>>, %arg5: memref<1x128xf32, #tpu.memory_space<vmem>>, %arg6: memref<128x128xf32, #tpu.memory_space<vmem>>, %arg7: memref<1x128xf32, #tpu.memory_space<vmem>>, %arg8: memref<2x128xf32, #tpu.memory_space<vmem>>) attributes {dimension_semantics = [#tpu.dimension_semantics<arbitrary>], iteration_bounds = array<i64: 1>, scalar_prefetch = 0 : i64, scratch_operands = 0 : i64, tpu.core_type = #tpu.core_type<tc>, window_params = [{pipeline_mode = #tpu.pipeline_mode<synchronous>, transform_indices = @transform_0, window_bounds = array<i64: 2, 64>}, {pipeline_mode = #tpu.pipeline_mode<synchronous>, transform_indices = @transform_1, window_bounds = array<i64: 64, 128>}, {pipeline_mode = #tpu.pipeline_mode<synchronous>, transform_indices = @transform_2, window_bounds = array<i64: 1, 128>}, {pipeline_mode = #tpu.pipeline_mode<synchronous>, transform_indices = @transform_3, window_bounds = array<i64: 128, 128>}, {pipeline_mode = #tpu.pipeline_mode<synchronous>, transform_indices = @transform_4, window_bounds = array<i64: 1, 128>}, {pipeline_mode = #tpu.pipeline_mode<synchronous>, transform_indices = @transform_5, window_bounds = array<i64: 128, 128>}, {pipeline_mode = #tpu.pipeline_mode<synchronous>, transform_indices = @transform_6, window_bounds = array<i64: 1, 128>}, {pipeline_mode = #tpu.pipeline_mode<synchronous>, transform_indices = @transform_7, window_bounds = array<i64: 2, 128>}]} {
    %c0 = arith.constant 0 : index
    %c0_0 = arith.constant 0 : index
    %0 = vector.load %arg1[%c0, %c0_0] : memref<2x64xf32, #tpu.memory_space<vmem>>, vector<2x64xf32>
    %c0_1 = arith.constant 0 : index
    %c0_2 = arith.constant 0 : index
    %1 = vector.load %arg2[%c0_1, %c0_2] : memref<64x128xf32, #tpu.memory_space<vmem>>, vector<64x128xf32>
    %c0_3 = arith.constant 0 : index
    %c0_4 = arith.constant 0 : index
    %2 = vector.load %arg3[%c0_3, %c0_4] : memref<1x128xf32, #tpu.memory_space<vmem>>, vector<1x128xf32>
    %cst = arith.constant dense<0.000000e+00> : vector<2x128xf32>
    %3 = tpu.matmul %0, %1, %cst {dimension_numbers = #tpu.dot_dimension_numbers<[1], [0], [0], [1], [0, 0, 1, 1], [], []>} : vector<2x64xf32>, vector<64x128xf32>, vector<2x128xf32> -> vector<2x128xf32>
    %4 = vector.broadcast %2 : vector<1x128xf32> to vector<2x128xf32>
    %5 = arith.addf %3, %4 : vector<2x128xf32>
    %cst_5 = arith.constant 0.000000e+00 : f32
    %6 = vector.broadcast %cst_5 : f32 to vector<2x128xf32>
    %7 = arith.cmpf oge, %5, %6 : vector<2x128xf32>
    %cst_6 = arith.constant 2.000000e-01 : f32
    %8 = vector.broadcast %cst_6 : f32 to vector<2x128xf32>
    %9 = arith.mulf %8, %5 : vector<2x128xf32>
    %10 = arith.select %7, %5, %9 : vector<2x128xi1>, vector<2x128xf32>
    %c0_7 = arith.constant 0 : index
    %c0_8 = arith.constant 0 : index
    %11 = vector.load %arg4[%c0_7, %c0_8] : memref<128x128xf32, #tpu.memory_space<vmem>>, vector<128x128xf32>
    %c0_9 = arith.constant 0 : index
    %c0_10 = arith.constant 0 : index
    %12 = vector.load %arg5[%c0_9, %c0_10] : memref<1x128xf32, #tpu.memory_space<vmem>>, vector<1x128xf32>
    %cst_11 = arith.constant dense<0.000000e+00> : vector<2x128xf32>
    %13 = tpu.matmul %10, %11, %cst_11 {dimension_numbers = #tpu.dot_dimension_numbers<[1], [0], [0], [1], [0, 0, 1, 1], [], []>} : vector<2x128xf32>, vector<128x128xf32>, vector<2x128xf32> -> vector<2x128xf32>
    %14 = vector.broadcast %12 : vector<1x128xf32> to vector<2x128xf32>
    %15 = arith.addf %13, %14 : vector<2x128xf32>
    %cst_12 = arith.constant 0.000000e+00 : f32
    %16 = vector.broadcast %cst_12 : f32 to vector<2x128xf32>
    %17 = arith.cmpf oge, %15, %16 : vector<2x128xf32>
    %cst_13 = arith.constant 2.000000e-01 : f32
    %18 = vector.broadcast %cst_13 : f32 to vector<2x128xf32>
    %19 = arith.mulf %18, %15 : vector<2x128xf32>
    %20 = arith.select %17, %15, %19 : vector<2x128xi1>, vector<2x128xf32>
    %c0_14 = arith.constant 0 : index
    %c0_15 = arith.constant 0 : index
    %21 = vector.load %arg6[%c0_14, %c0_15] : memref<128x128xf32, #tpu.memory_space<vmem>>, vector<128x128xf32>
    %c0_16 = arith.constant 0 : index
    %c0_17 = arith.constant 0 : index
    %22 = vector.load %arg7[%c0_16, %c0_17] : memref<1x128xf32, #tpu.memory_space<vmem>>, vector<1x128xf32>
    %cst_18 = arith.constant dense<0.000000e+00> : vector<2x128xf32>
    %23 = tpu.matmul %20, %21, %cst_18 {dimension_numbers = #tpu.dot_dimension_numbers<[1], [0], [0], [1], [0, 0, 1, 1], [], []>} : vector<2x128xf32>, vector<128x128xf32>, vector<2x128xf32> -> vector<2x128xf32>
    %24 = vector.broadcast %22 : vector<1x128xf32> to vector<2x128xf32>
    %25 = arith.addf %23, %24 : vector<2x128xf32>
    %c0_19 = arith.constant 0 : index
    %c0_20 = arith.constant 0 : index
    %26 = vector.load %arg8[%c0_19, %c0_20] : memref<2x128xf32, #tpu.memory_space<vmem>>, vector<2x128xf32>
    tpu.vector_store %arg8[%c0_19, %c0_20], %25 {strides = array<i32>} : memref<2x128xf32, #tpu.memory_space<vmem>>, vector<2x128xf32>,
    return
  }
  func.func @transform_0(%arg0: i32) -> (i32, i32) {
    %c0_i32 = arith.constant 0 : i32
    %c0_i32_0 = arith.constant 0 : i32
    %c0_i32_1 = arith.constant 0 : i32
    return %c0_i32, %c0_i32_0 : i32, i32
  }
  func.func @transform_1(%arg0: i32) -> (i32, i32) {
    %c0_i32 = arith.constant 0 : i32
    %c0_i32_0 = arith.constant 0 : i32
    %c0_i32_1 = arith.constant 0 : i32
    return %c0_i32, %c0_i32_0 : i32, i32
  }
  func.func @transform_2(%arg0: i32) -> (i32, i32) {
    %c0_i32 = arith.constant 0 : i32
    %c0_i32_0 = arith.constant 0 : i32
    %c0_i32_1 = arith.constant 0 : i32
    return %c0_i32, %c0_i32_0 : i32, i32
  }
  func.func @transform_3(%arg0: i32) -> (i32, i32) {
    %c0_i32 = arith.constant 0 : i32
    %c0_i32_0 = arith.constant 0 : i32
    %c0_i32_1 = arith.constant 0 : i32
    return %c0_i32, %c0_i32_0 : i32, i32
  }
  func.func @transform_4(%arg0: i32) -> (i32, i32) {
    %c0_i32 = arith.constant 0 : i32
    %c0_i32_0 = arith.constant 0 : i32
    %c0_i32_1 = arith.constant 0 : i32
    return %c0_i32, %c0_i32_0 : i32, i32
  }
  func.func @transform_5(%arg0: i32) -> (i32, i32) {
    %c0_i32 = arith.constant 0 : i32
    %c0_i32_0 = arith.constant 0 : i32
    %c0_i32_1 = arith.constant 0 : i32
    return %c0_i32, %c0_i32_0 : i32, i32
  }
  func.func @transform_6(%arg0: i32) -> (i32, i32) {
    %c0_i32 = arith.constant 0 : i32
    %c0_i32_0 = arith.constant 0 : i32
    %c0_i32_1 = arith.constant 0 : i32
    return %c0_i32, %c0_i32_0 : i32, i32
  }
  func.func @transform_7(%arg0: i32) -> (i32, i32) {
    %c0_i32 = arith.constant 0 : i32
    %c0_i32_0 = arith.constant 0 : i32
    %c0_i32_1 = arith.constant 0 : i32
    return %c0_i32, %c0_i32_0 : i32, i32
  }
}

</mosaic_0001>

<llo_original>
// kernel: tpu_custom_call.1
$region0: #{tpu_custom_call.1}
  #allocation0 [shape = 'u32[]', space=smem, size = 0x4, offset = 0x4, fixed_abs, tag = 'smem constant byte address 0x4 - core index']
  #allocation1 [shape = 'u32[144,128]{1,0:T(1,128)}', space=vmem, size = 0x12000, scoped, tag = 'internal scratch']
  %s0 = inlined_call_operand.hbm [shape: f32[2,64], index: 0, kind: input, shape index: {}]
  %s1 = inlined_call_operand.hbm [shape: f32[64,128], index: 1, kind: input, shape index: {}]
  %s2 = inlined_call_operand.vmem [shape: f32[1,128], index: 2, kind: input, shape index: {}]
  %s3 = inlined_call_operand.hbm [shape: f32[128,128], index: 3, kind: input, shape index: {}]
  %s4 = inlined_call_operand.vmem [shape: f32[1,128], index: 4, kind: input, shape index: {}]
  %s5 = inlined_call_operand.hbm [shape: f32[128,128], index: 5, kind: input, shape index: {}]
  %s6 = inlined_call_operand.vmem [shape: f32[1,128], index: 6, kind: input, shape index: {}]
  %s7 = inlined_call_operand.hbm [shape: f32[2,128], index: 7, kind: output, shape index: {}]
  %s8 = sld [smem:[#allocation0]]
  $region54: #{tpu_custom_call.1} parent=0
    _
  %s10 = ssub.s32 1, %s8
  %s11 = scalar_select 0, %s10, %s8
  $region1: #{tpu_custom_call.1} parent=0
    #allocation2 [shape = 'u8[1024]{0}', space=vmem, size = 0x400, scoped, tag = 'input window, operand 0, single buffered']
    #allocation3 [shape = 's32[1]{0}', space=sflag, size = 0x4, scoped, tag = 'scoped memory for tpu_custom_call.1']
    #allocation4 [shape = 's32[1]{0}', space=sflag, size = 0x4, scoped, tag = 'scoped memory for tpu_custom_call.1']
    #allocation5 [shape = 'u8[32768]{0}', space=vmem, size = 0x8000, scoped, tag = 'input window, operand 1, single buffered']
    #allocation6 [shape = 's32[1]{0}', space=sflag, size = 0x4, scoped, tag = 'scoped memory for tpu_custom_call.1']
    #allocation7 [shape = 'u8[65536]{0}', space=vmem, size = 0x10000, scoped, tag = 'input window, operand 3, single buffered']
    #allocation8 [shape = 'u8[65536]{0}', space=vmem, size = 0x10000, scoped, tag = 'input window, operand 5, single buffered']
    #allocation9 [shape = 's32[1]{0}', space=sflag, size = 0x4, scoped, tag = 'scoped memory for tpu_custom_call.1']
    #allocation10 [shape = 'u8[1024]{0}', space=vmem, size = 0x400, scoped, tag = 'output window, operand 0, single buffered']
    %12 = vsyncpa [#allocation3], 0
    %13 = vsyncpa [#allocation6], 0
    %14 = vsyncpa [#allocation9], 0
    %15 = vsyncpa [#allocation4], 0
    // Predicated region
    $region2: #{tpu_custom_call.1} parent=1 // pred_check
      _
    $region3: #{tpu_custom_call.1} parent=1 // pred_check_branch
      %17 = sbr.rel (0) target = $region5
    $region4: #{tpu_custom_call.1} parent=1 // pred_region
      %s19 = ssub.s32 32, 32
      %20 = vsyncadd [#allocation3], %s19
      %s22 = sshll.u32 [#allocation2], 4
      %s23 = int_to_ptr.vmem [resolvable:$true] %s22
      %25 = dma.hbm_to_vmem [thread:$0]  %s0, 32, %s23, [#allocation3]
    $region5: #{tpu_custom_call.1} parent=1 // pred_fallthru
      _
    // Predicated region
    $region6: #{tpu_custom_call.1} parent=1 // pred_check
      _
    $region7: #{tpu_custom_call.1} parent=1 // pred_check_branch
      %27 = sbr.rel (0) target = $region9
    $region8: #{tpu_custom_call.1} parent=1 // pred_region
      %s29 = ssub.s32 1024, 1024
      %30 = vsyncadd [#allocation6], %s29
      %s31 = sshll.u32 [#allocation5], 4
      %s32 = int_to_ptr.vmem [resolvable:$true] %s31
      %37 = dma.hbm_to_vmem [thread:$0]  %s1, 1024, %s32, [#allocation6], 128, 128, 8
    $region9: #{tpu_custom_call.1} parent=1 // pred_fallthru
      _
    // Predicated region
    $region10: #{tpu_custom_call.1} parent=1 // pred_check
      _
    $region11: #{tpu_custom_call.1} parent=1 // pred_check_branch
      %39 = sbr.rel (0) target = $region13
    $region12: #{tpu_custom_call.1} parent=1 // pred_region
      _
    $region13: #{tpu_custom_call.1} parent=1 // pred_fallthru
      _
    // Predicated region
    $region14: #{tpu_custom_call.1} parent=1 // pred_check
      _
    $region15: #{tpu_custom_call.1} parent=1 // pred_check_branch
      %41 = sbr.rel (0) target = $region17
    $region16: #{tpu_custom_call.1} parent=1 // pred_region
      %s43 = ssub.s32 2048, 2048
      %44 = vsyncadd [#allocation6], %s43
      %s45 = sshll.u32 [#allocation7], 4
      %s46 = int_to_ptr.vmem [resolvable:$true] %s45
      %51 = dma.hbm_to_vmem [thread:$0]  %s3, 2048, %s46, [#allocation6], 128, 128, 8
    $region17: #{tpu_custom_call.1} parent=1 // pred_fallthru
      _
    // Predicated region
    $region18: #{tpu_custom_call.1} parent=1 // pred_check
      _
    $region19: #{tpu_custom_call.1} parent=1 // pred_check_branch
      %53 = sbr.rel (0) target = $region21
    $region20: #{tpu_custom_call.1} parent=1 // pred_region
      _
    $region21: #{tpu_custom_call.1} parent=1 // pred_fallthru
      _
    // Predicated region
    $region22: #{tpu_custom_call.1} parent=1 // pred_check
      _
    $region23: #{tpu_custom_call.1} parent=1 // pred_check_branch
      %55 = sbr.rel (0) target = $region25
    $region24: #{tpu_custom_call.1} parent=1 // pred_region
      %s57 = ssub.s32 2048, 2048
      %58 = vsyncadd [#allocation9], %s57
      %s59 = sshll.u32 [#allocation8], 4
      %s60 = int_to_ptr.vmem [resolvable:$true] %s59
      %65 = dma.hbm_to_vmem [thread:$0]  %s5, 2048, %s60, [#allocation9], 128, 128, 8
    $region25: #{tpu_custom_call.1} parent=1 // pred_fallthru
      _
    // Predicated region
    $region26: #{tpu_custom_call.1} parent=1 // pred_check
      _
    $region27: #{tpu_custom_call.1} parent=1 // pred_check_branch
      %67 = sbr.rel (0) target = $region29
    $region28: #{tpu_custom_call.1} parent=1 // pred_region
      _
    $region29: #{tpu_custom_call.1} parent=1 // pred_fallthru
      _
    // Predicated region
    $region30: #{tpu_custom_call.1} parent=1 // pred_check
      _
    $region31: #{tpu_custom_call.1} parent=1 // pred_check_branch
      %69 = sbr.rel (0) target = $region33
    $region32: #{tpu_custom_call.1} parent=1 // pred_region
      %70 = dma.done [#allocation3], 32
    $region33: #{tpu_custom_call.1} parent=1 // pred_fallthru
      _
    // Predicated region
    $region34: #{tpu_custom_call.1} parent=1 // pred_check
      _
    $region35: #{tpu_custom_call.1} parent=1 // pred_check_branch
      %72 = sbr.rel (0) target = $region37
    $region36: #{tpu_custom_call.1} parent=1 // pred_region
      %73 = dma.done [#allocation6], 1024
    $region37: #{tpu_custom_call.1} parent=1 // pred_fallthru
      _
    // Predicated region
    $region38: #{tpu_custom_call.1} parent=1 // pred_check
      _
    $region39: #{tpu_custom_call.1} parent=1 // pred_check_branch
      %75 = sbr.rel (0) target = $region41
    $region40: #{tpu_custom_call.1} parent=1 // pred_region
      %76 = dma.done [#allocation6], 2048
    $region41: #{tpu_custom_call.1} parent=1 // pred_fallthru
      _
    // Predicated region
    $region42: #{tpu_custom_call.1} parent=1 // pred_check
      _
    $region43: #{tpu_custom_call.1} parent=1 // pred_check_branch
      %78 = sbr.rel (0) target = $region45
    $region44: #{tpu_custom_call.1} parent=1 // pred_region
      %79 = dma.done [#allocation9], 2048
    $region45: #{tpu_custom_call.1} parent=1 // pred_fallthru
      _
    %v80 = vld [vmem:[#allocation2] sm:$0x3]
    %v81 = vld [vmem:[#allocation5] sm:$0xff]
    %v82 = vld [vmem:[#allocation5 + $0x8] sm:$0xff]
    %v83 = vld [vmem:[#allocation5 + $0x10] sm:$0xff]
    %v84 = vld [vmem:[#allocation5 + $0x18] sm:$0xff]
    %v85 = vld [vmem:[#allocation5 + $0x20] sm:$0xff]
    %v86 = vld [vmem:[#allocation5 + $0x28] sm:$0xff]
    %v87 = vld [vmem:[#allocation5 + $0x30] sm:$0xff]
    %v88 = vld [vmem:[#allocation5 + $0x38] sm:$0xff]
    %v89 = vld [vmem:[%s2] sm:$0x1]
    %v91 = vlaneseq
    %v92 = vshrl.u32 %v91, 7
    %v93 = vsub.s32 0, %v92
    %v94 = vrot.slane %v89, %v93
    %vm96 = vcmask 523264
    %v98 = vsel %vm96, %v80, 0
    %100 = vmatprep.subr.mxu0 0.0
    %101 = vmatpush1.msra.mxu0 %v81
    %102 = vmatprep.subr.mxu0 0.0
    %103 = vmatpush1.msra.mxu0 %v82
    %104 = vmatprep.subr.mxu0 0.0
    %105 = vmatpush1.msra.mxu0 %v83
    %106 = vmatprep.subr.mxu0 0.0
    %107 = vmatpush1.msra.mxu0 %v84
    %108 = vmatprep.subr.mxu0 0.0
    %109 = vmatpush1.msra.mxu0 %v85
    %110 = vmatprep.subr.mxu0 0.0
    %111 = vmatpush1.msra.mxu0 %v86
    %112 = vmatprep.subr.mxu0 0.0
    %113 = vmatpush1.msra.mxu0 %v87
    %114 = vmatprep.subr.mxu0 0.0
    %115 = vmatpush1.msra.mxu0 %v88
    %116 = vmatprep.subr.mxu0 0.0
    %117 = vmatpush1.msra.mxu0 0.0
    %118 = vmatprep.subr.mxu0 0.0
    %119 = vmatpush1.msra.mxu0 0.0
    %120 = vmatprep.subr.mxu0 0.0
    %121 = vmatpush1.msra.mxu0 0.0
    %122 = vmatprep.subr.mxu0 0.0
    %123 = vmatpush1.msra.mxu0 0.0
    %124 = vmatprep.subr.mxu0 0.0
    %125 = vmatpush1.msra.mxu0 0.0
    %126 = vmatprep.subr.mxu0 0.0
    %127 = vmatpush1.msra.mxu0 0.0
    %128 = vmatprep.subr.mxu0 0.0
    %129 = vmatpush1.msra.mxu0 0.0
    %130 = vmatprep.subr.mxu0 0.0
    %131 = vmatpush1.msra.mxu0 0.0
    %132 = vmatprep.subr.mxu0 0.0
    %133 = vmatpush1.msra.mxu0 0.0
    %134 = vmatprep.subr.mxu0 0.0
    %135 = vmatpush1.msra.mxu0 0.0
    %136 = vmatprep.subr.mxu0 0.0
    %137 = vmatpush1.msra.mxu0 0.0
    %138 = vmatprep.subr.mxu0 0.0
    %139 = vmatpush1.msra.mxu0 0.0
    %140 = vmatprep.subr.mxu0 0.0
    %141 = vmatpush1.msra.mxu0 0.0
    %142 = vmatprep.subr.mxu0 0.0
    %143 = vmatpush1.msra.mxu0 0.0
    %144 = vmatprep.subr.mxu0 0.0
    %145 = vmatpush1.msra.mxu0 0.0
    %146 = vmatprep.subr.mxu0 0.0
    %147 = vmatpush1.msra.mxu0 0.0
    %148 = vmatprep.subr.mxu0 0.0
    %149 = vmatpush1.msra.mxu0 0.0
    %150 = vmatprep.subr.mxu0 0.0
    %151 = vmatpush1.msra.mxu0 0.0
    %152 = vmatprep.subr.mxu0 0.0
    %153 = vmatpush1.msra.mxu0 0.0
    %154 = vmatprep.subr.mxu0 0.0
    %155 = vmatpush1.msra.mxu0 0.0
    %156 = vmatprep.subr.mxu0 0.0
    %157 = vmatpush1.msra.mxu0 0.0
    %158 = vmatprep.subr.mxu0 0.0
    %159 = vmatpush1.msra.mxu0 0.0
    %160 = vmatprep.subr.mxu0 0.0
    %161 = vmatpush1.msra.mxu0 0.0
    %162 = vmatprep.subr.mxu0 0.0
    %163 = vmatpush1.msra.mxu0 0.0
    %164 = vmatprep.mubr.f32.mxu0 0.0
    %165 = vmatmul.mubr.f32.gmra.mrb[0].mxu0 %v98
    %v166 = vpop.f32.mrb[0].mxu0
    %v167 = vadd.f32 %v94, %v166
    %v168 = vpop.f32.mrb[0].mxu0
    %169 = vdwg.mxu0
    %vm170 = vcmp.ge.f32.partialorder %v167, 0.0
    %v171 = vmul.f32 %v167, 0.2
    %v172 = vsel %vm170, %v167, %v171
    %v173 = vld [vmem:[#allocation7] sm:$0xff]
    %v174 = vld [vmem:[#allocation7 + $0x8] sm:$0xff]
    %v175 = vld [vmem:[#allocation7 + $0x10] sm:$0xff]
    %v176 = vld [vmem:[#allocation7 + $0x18] sm:$0xff]
    %v177 = vld [vmem:[#allocation7 + $0x20] sm:$0xff]
    %v178 = vld [vmem:[#allocation7 + $0x28] sm:$0xff]
    %v179 = vld [vmem:[#allocation7 + $0x30] sm:$0xff]
    %v180 = vld [vmem:[#allocation7 + $0x38] sm:$0xff]
    %v181 = vld [vmem:[#allocation7 + $0x40] sm:$0xff]
    %v182 = vld [vmem:[#allocation7 + $0x48] sm:$0xff]
    %v183 = vld [vmem:[#allocation7 + $0x50] sm:$0xff]
    %v184 = vld [vmem:[#allocation7 + $0x58] sm:$0xff]
    %v185 = vld [vmem:[#allocation7 + $0x60] sm:$0xff]
    %v186 = vld [vmem:[#allocation7 + $0x68] sm:$0xff]
    %v187 = vld [vmem:[#allocation7 + $0x70] sm:$0xff]
    %v188 = vld [vmem:[#allocation7 + $0x78] sm:$0xff]
    %v189 = vld [vmem:[%s4] sm:$0x1]
    %v191 = vlaneseq
    %v192 = vshrl.u32 %v191, 7
    %v193 = vsub.s32 0, %v192
    %v194 = vrot.slane %v189, %v193
    %196 = vmatprep.subr.mxu0 0.0
    %197 = vmatpush1.msra.mxu0 %v173
    %198 = vmatprep.subr.mxu0 0.0
    %199 = vmatpush1.msra.mxu0 %v174
    %200 = vmatprep.subr.mxu0 0.0
    %201 = vmatpush1.msra.mxu0 %v175
    %202 = vmatprep.subr.mxu0 0.0
    %203 = vmatpush1.msra.mxu0 %v176
    %204 = vmatprep.subr.mxu0 0.0
    %205 = vmatpush1.msra.mxu0 %v177
    %206 = vmatprep.subr.mxu0 0.0
    %207 = vmatpush1.msra.mxu0 %v178
    %208 = vmatprep.subr.mxu0 0.0
    %209 = vmatpush1.msra.mxu0 %v179
    %210 = vmatprep.subr.mxu0 0.0
    %211 = vmatpush1.msra.mxu0 %v180
    %212 = vmatprep.subr.mxu0 0.0
    %213 = vmatpush1.msra.mxu0 %v181
    %214 = vmatprep.subr.mxu0 0.0
    %215 = vmatpush1.msra.mxu0 %v182
    %216 = vmatprep.subr.mxu0 0.0
    %217 = vmatpush1.msra.mxu0 %v183
    %218 = vmatprep.subr.mxu0 0.0
    %219 = vmatpush1.msra.mxu0 %v184
    %220 = vmatprep.subr.mxu0 0.0
    %221 = vmatpush1.msra.mxu0 %v185
    %222 = vmatprep.subr.mxu0 0.0
    %223 = vmatpush1.msra.mxu0 %v186
    %224 = vmatprep.subr.mxu0 0.0
    %225 = vmatpush1.msra.mxu0 %v187
    %226 = vmatprep.subr.mxu0 0.0
    %227 = vmatpush1.msra.mxu0 %v188
    %228 = vmatprep.subr.mxu0 0.0
    %229 = vmatpush1.msra.mxu0 0.0
    %230 = vmatprep.subr.mxu0 0.0
    %231 = vmatpush1.msra.mxu0 0.0
    %232 = vmatprep.subr.mxu0 0.0
    %233 = vmatpush1.msra.mxu0 0.0
    %234 = vmatprep.subr.mxu0 0.0
    %235 = vmatpush1.msra.mxu0 0.0
    %236 = vmatprep.subr.mxu0 0.0
    %237 = vmatpush1.msra.mxu0 0.0
    %238 = vmatprep.subr.mxu0 0.0
    %239 = vmatpush1.msra.mxu0 0.0
    %240 = vmatprep.subr.mxu0 0.0
    %241 = vmatpush1.msra.mxu0 0.0
    %242 = vmatprep.subr.mxu0 0.0
    %243 = vmatpush1.msra.mxu0 0.0
    %244 = vmatprep.subr.mxu0 0.0
    %245 = vmatpush1.msra.mxu0 0.0
    %246 = vmatprep.subr.mxu0 0.0
    %247 = vmatpush1.msra.mxu0 0.0
    %248 = vmatprep.subr.mxu0 0.0
    %249 = vmatpush1.msra.mxu0 0.0
    %250 = vmatprep.subr.mxu0 0.0
    %251 = vmatpush1.msra.mxu0 0.0
    %252 = vmatprep.subr.mxu0 0.0
    %253 = vmatpush1.msra.mxu0 0.0
    %254 = vmatprep.subr.mxu0 0.0
    %255 = vmatpush1.msra.mxu0 0.0
    %256 = vmatprep.subr.mxu0 0.0
    %257 = vmatpush1.msra.mxu0 0.0
    %258 = vmatprep.subr.mxu0 0.0
    %259 = vmatpush1.msra.mxu0 0.0
    %260 = vmatprep.mubr.f32.mxu0 0.0
    %261 = vmatmul.mubr.f32.gmra.mrb[0].mxu0 %v172
    %v262 = vpop.f32.mrb[0].mxu0
    %v263 = vadd.f32 %v194, %v262
    %v264 = vpop.f32.mrb[0].mxu0
    %265 = vdwg.mxu0
    %vm266 = vcmp.ge.f32.partialorder %v263, 0.0
    %v267 = vmul.f32 %v263, 0.2
    %v268 = vsel %vm266, %v263, %v267
    %v269 = vld [vmem:[#allocation8] sm:$0xff]
    %v270 = vld [vmem:[#allocation8 + $0x8] sm:$0xff]
    %v271 = vld [vmem:[#allocation8 + $0x10] sm:$0xff]
    %v272 = vld [vmem:[#allocation8 + $0x18] sm:$0xff]
    %v273 = vld [vmem:[#allocation8 + $0x20] sm:$0xff]
    %v274 = vld [vmem:[#allocation8 + $0x28] sm:$0xff]
    %v275 = vld [vmem:[#allocation8 + $0x30] sm:$0xff]
    %v276 = vld [vmem:[#allocation8 + $0x38] sm:$0xff]
    %v277 = vld [vmem:[#allocation8 + $0x40] sm:$0xff]
    %v278 = vld [vmem:[#allocation8 + $0x48] sm:$0xff]
    %v279 = vld [vmem:[#allocation8 + $0x50] sm:$0xff]
    %v280 = vld [vmem:[#allocation8 + $0x58] sm:$0xff]
    %v281 = vld [vmem:[#allocation8 + $0x60] sm:$0xff]
    %v282 = vld [vmem:[#allocation8 + $0x68] sm:$0xff]
    %v283 = vld [vmem:[#allocation8 + $0x70] sm:$0xff]
    %v284 = vld [vmem:[#allocation8 + $0x78] sm:$0xff]
    %v285 = vld [vmem:[%s6] sm:$0x1]
    %v287 = vlaneseq
    %v288 = vshrl.u32 %v287, 7
    %v289 = vsub.s32 0, %v288
    %v290 = vrot.slane %v285, %v289
    %292 = vmatprep.subr.mxu0 0.0
    %293 = vmatpush1.msra.mxu0 %v269
    %294 = vmatprep.subr.mxu0 0.0
    %295 = vmatpush1.msra.mxu0 %v270
    %296 = vmatprep.subr.mxu0 0.0
    %297 = vmatpush1.msra.mxu0 %v271
    %298 = vmatprep.subr.mxu0 0.0
    %299 = vmatpush1.msra.mxu0 %v272
    %300 = vmatprep.subr.mxu0 0.0
    %301 = vmatpush1.msra.mxu0 %v273
    %302 = vmatprep.subr.mxu0 0.0
    %303 = vmatpush1.msra.mxu0 %v274
    %304 = vmatprep.subr.mxu0 0.0
    %305 = vmatpush1.msra.mxu0 %v275
    %306 = vmatprep.subr.mxu0 0.0
    %307 = vmatpush1.msra.mxu0 %v276
    %308 = vmatprep.subr.mxu0 0.0
    %309 = vmatpush1.msra.mxu0 %v277
    %310 = vmatprep.subr.mxu0 0.0
    %311 = vmatpush1.msra.mxu0 %v278
    %312 = vmatprep.subr.mxu0 0.0
    %313 = vmatpush1.msra.mxu0 %v279
    %314 = vmatprep.subr.mxu0 0.0
    %315 = vmatpush1.msra.mxu0 %v280
    %316 = vmatprep.subr.mxu0 0.0
    %317 = vmatpush1.msra.mxu0 %v281
    %318 = vmatprep.subr.mxu0 0.0
    %319 = vmatpush1.msra.mxu0 %v282
    %320 = vmatprep.subr.mxu0 0.0
    %321 = vmatpush1.msra.mxu0 %v283
    %322 = vmatprep.subr.mxu0 0.0
    %323 = vmatpush1.msra.mxu0 %v284
    %324 = vmatprep.subr.mxu0 0.0
    %325 = vmatpush1.msra.mxu0 0.0
    %326 = vmatprep.subr.mxu0 0.0
    %327 = vmatpush1.msra.mxu0 0.0
    %328 = vmatprep.subr.mxu0 0.0
    %329 = vmatpush1.msra.mxu0 0.0
    %330 = vmatprep.subr.mxu0 0.0
    %331 = vmatpush1.msra.mxu0 0.0
    %332 = vmatprep.subr.mxu0 0.0
    %333 = vmatpush1.msra.mxu0 0.0
    %334 = vmatprep.subr.mxu0 0.0
    %335 = vmatpush1.msra.mxu0 0.0
    %336 = vmatprep.subr.mxu0 0.0
    %337 = vmatpush1.msra.mxu0 0.0
    %338 = vmatprep.subr.mxu0 0.0
    %339 = vmatpush1.msra.mxu0 0.0
    %340 = vmatprep.subr.mxu0 0.0
    %341 = vmatpush1.msra.mxu0 0.0
    %342 = vmatprep.subr.mxu0 0.0
    %343 = vmatpush1.msra.mxu0 0.0
    %344 = vmatprep.subr.mxu0 0.0
    %345 = vmatpush1.msra.mxu0 0.0
    %346 = vmatprep.subr.mxu0 0.0
    %347 = vmatpush1.msra.mxu0 0.0
    %348 = vmatprep.subr.mxu0 0.0
    %349 = vmatpush1.msra.mxu0 0.0
    %350 = vmatprep.subr.mxu0 0.0
    %351 = vmatpush1.msra.mxu0 0.0
    %352 = vmatprep.subr.mxu0 0.0
    %353 = vmatpush1.msra.mxu0 0.0
    %354 = vmatprep.subr.mxu0 0.0
    %355 = vmatpush1.msra.mxu0 0.0
    %356 = vmatprep.mubr.f32.mxu0 0.0
    %357 = vmatmul.mubr.f32.gmra.mrb[0].mxu0 %v268
    %v358 = vpop.f32.mrb[0].mxu0
    %v359 = vadd.f32 %v290, %v358
    %v360 = vpop.f32.mrb[0].mxu0
    %361 = vdwg.mxu0
    %362 = vst [vmem:[#allocation10] sm:$0x3] %v359
    // Predicated region
    $region46: #{tpu_custom_call.1} parent=1 // pred_check
      _
    $region47: #{tpu_custom_call.1} parent=1 // pred_check_branch
      %364 = sbr.rel (0) target = $region49
    $region48: #{tpu_custom_call.1} parent=1 // pred_region
      %s366 = ssub.s32 32, 32
      %367 = vsyncadd [#allocation4], %s366
      %s369 = sshll.u32 [#allocation10], 4
      %s370 = int_to_ptr.vmem [resolvable:$true] %s369
      %372 = dma.vmem_to_hbm [thread:$0]  %s370, 32, %s7, [#allocation4]
    $region49: #{tpu_custom_call.1} parent=1 // pred_fallthru
      _
    // Predicated region
    $region50: #{tpu_custom_call.1} parent=1 // pred_check
      _
    $region51: #{tpu_custom_call.1} parent=1 // pred_check_branch
      %374 = sbr.rel (0) target = $region53
    $region52: #{tpu_custom_call.1} parent=1 // pred_region
      %375 = dma.done [#allocation4], 32
    $region53: #{tpu_custom_call.1} parent=1 // pred_fallthru
      _
    %376 = vsyncpa [#allocation3], 1
    %377 = vsyncpa [#allocation6], 1
    %378 = vsyncpa [#allocation9], 1
    %379 = vsyncpa [#allocation4], 1

</llo_original>
